<compile_context>
chip_gen: v5e
topology: v5e:2x2
jax: 0.10.0
libtpu: 0.0.40
codegen_flags: <defaults>
</compile_context>

<pallas_src>
import jax
import jax.numpy as jnp
from jax.experimental import pallas as pl
from jax.experimental.pallas import tpu as pltpu

EPS = 1e-12


def _layernorm_nct_kernel(x_ref, g_ref, b_ref, o_ref):
    # x_ref/o_ref: (1, C, tile_T) block; g_ref/b_ref: (C, 1).
    #
    # TAIL-TILE SAFETY: when T % tile_T != 0, the out-of-bounds lanes of the
    # last T-tile contain stale VMEM (input reads are NOT masked; only the
    # output store is). All reductions below are over the C (sublane) axis
    # only, so garbage lanes never contaminate in-bounds lanes, and the masked
    # store discards them. Do NOT add any reduction over the lane (T) axis
    # here without masking those lanes first.
    x = x_ref[...].astype(jnp.float32)                      # (1, C, tT)
    inv_c = jnp.float32(1.0 / x.shape[1])

    # Single pass: two independent cross-sublane reduction trees (XLU).
    s1 = jnp.sum(x, axis=1, keepdims=True)                  # (1, 1, tT)
    s2 = jnp.sum(x * x, axis=1, keepdims=True)              # (1, 1, tT)
    mean = s1 * inv_c
    # E[x^2] - mean^2 can go slightly negative from cancellation; clamp.
    var = jnp.maximum(s2 * inv_c - mean * mean, 0.0)
    inv = jax.lax.rsqrt(var + EPS)                          # EUP

    gamma = g_ref[...].astype(jnp.float32)                  # (C, 1) -> lane splat (free)
    beta = b_ref[...].astype(jnp.float32)
    y = (x - mean) * inv * gamma[None, :, :] + beta[None, :, :]
    o_ref[...] = y.astype(o_ref.dtype)


def _pick_tile_t(T, C, B, itemsize):
    """Lane-tile width: multiple of 128 (or full T when T <= 128)."""
    if T <= 128:
        return T  # full lane extent; nothing to tile

    # Per-lane VMEM cost of one (1, C, tile_t) block:
    #   2x input + 2x output double-buffers in I/O dtype + ~3 f32 temporaries.
    bytes_per_lane = C * (4 * itemsize + 3 * 4)
    budget = 24 << 20                       # fits 32 MiB scoped VMEM with headroom
    max_tile = (budget // bytes_per_lane) // 128 * 128
    max_tile = min(max(max_tile, 128), 2048)  # roofline flat past ~1024-2048 lanes

    # Step-count targets: B * steps >= 8 (megacore + pipelining), >= 2 along T,
    # but never shrink tiles below the bandwidth floor just to add steps.
    floor = 512 if itemsize >= 4 else 1024
    desired_steps = max(2, pl.cdiv(8, B))
    cap8 = (pl.cdiv(T, desired_steps) // 128) * 128   # ~8 total steps
    cap2 = (pl.cdiv(T, 2) // 128) * 128               # >= 2 steps along T
    cap_from_steps = max(128, max(cap8, min(floor, cap2)))
    upper = max(128, min(max_tile, cap_from_steps))

    # Prefer a tile whose last T-tile is full (divides T) or at least half-full,
    # keeping stores lane-dense (unmasked vst) and strided DMA rows long.
    div_cand = next((c for c in range(upper, 127, -128) if T % c == 0), None)
    if div_cand is not None and 2 * div_cand >= upper:
        return div_cand
    half_cand = next((c for c in range(upper, 127, -128)
                      if T % c == 0 or T % c >= c // 2), None)
    if half_cand is not None:
        return half_cand
    return div_cand if div_cand is not None else upper


def layer_norm_nct(x_nct, gamma, beta, tile_t=None, donate_input=False):
    """x_nct: (B, C, T). Returns (B, C, T) layer-normalized over C (eps=1e-12).

    Equivalent to torch: LayerNorm(C)(x.transpose(1,-1)).transpose(1,-1),
    with no wrapper transposes (kernel reduces over the sublane axis).
    """
    B, C, T = x_nct.shape
    itemsize = jnp.dtype(x_nct.dtype).itemsize
    if tile_t is None:
        tile_t = _pick_tile_t(T, C, B, itemsize)
    grid_t = pl.cdiv(T, tile_t)

    g2 = gamma.reshape(C, 1)
    b2 = beta.reshape(C, 1)

    kwargs = {}
    if donate_input:
        # Same shape/dtype in NCT layout -> output can reuse the input HBM buffer.
        kwargs["input_output_aliases"] = {0: 0}

    cost = pl.CostEstimate(
        flops=10 * B * C * T,
        transcendentals=B * T,
        bytes_accessed=2 * B * C * T * itemsize
        + 2 * C * jnp.dtype(gamma.dtype).itemsize,
    )

    out = pl.pallas_call(
        _layernorm_nct_kernel,
        out_shape=jax.ShapeDtypeStruct((B, C, T), x_nct.dtype),
        grid_spec=pltpu.PrefetchScalarGridSpec(
            num_scalar_prefetch=0,
            grid=(B, grid_t),
            in_specs=[
                pl.BlockSpec((1, C, tile_t), lambda b, t: (b, 0, t)),
                pl.BlockSpec((C, 1), lambda b, t: (0, 0)),
                pl.BlockSpec((C, 1), lambda b, t: (0, 0)),
            ],
            out_specs=pl.BlockSpec((1, C, tile_t), lambda b, t: (b, 0, t)),
        ),
        compiler_params=pltpu.CompilerParams(
            dimension_semantics=("parallel", "parallel"),
            # v5e default scoped VMEM is only 16 MiB; 32 MiB is safe on all
            # generations (v7x physical is 64 MiB) and covers the 24 MiB budget.
            vmem_limit_bytes=32 << 20,
        ),
        cost_estimate=cost,
        **kwargs,
    )(x_nct, g2, b2)
    return out


def _reference(x_nct, gamma, beta):
    x = x_nct.astype(jnp.float32)
    mean = jnp.mean(x, axis=1, keepdims=True)
    var = jnp.mean((x - mean) ** 2, axis=1, keepdims=True)
    y = (x - mean) / jnp.sqrt(var + EPS)
    y = (y * gamma.reshape(1, -1, 1).astype(jnp.float32)
         + beta.reshape(1, -1, 1).astype(jnp.float32))
    return y.astype(x_nct.dtype)


if __name__ == "__main__":
    B, C, T = 2, 32, 256  # nout = C (normalized axis); T lane-dense
    key = jax.random.PRNGKey(0)
    kx, kg, kb = jax.random.split(key, 3)

    x = jax.random.normal(kx, (B, C, T), dtype=jnp.float32)
    gamma = 1.0 + 0.1 * jax.random.normal(kg, (C,), dtype=jnp.float32)
    beta = 0.1 * jax.random.normal(kb, (C,), dtype=jnp.float32)

    ref = _reference(x, gamma, beta)

    # Auto-picked tile (128 lanes here -> grid (2, 2): multi-step pipeline).
    out = jax.block_until_ready(layer_norm_nct(x, gamma, beta))
    assert out.shape == (B, C, T)
    assert jnp.allclose(out, ref, atol=1e-5, rtol=1e-5), "mismatch (auto tile)"

    # Full-T tile to exercise the single-block-per-batch path.
    out_full = jax.block_until_ready(layer_norm_nct(x, gamma, beta, tile_t=T))
    assert jnp.allclose(out_full, ref, atol=1e-5, rtol=1e-5), "mismatch (full-T tile)"

    # bf16 I/O path: halves HBM bytes, f32 math happens inside the kernel.
    xb = x.astype(jnp.bfloat16)
    ref_b = _reference(xb, gamma, beta)
    out_b = jax.block_until_ready(layer_norm_nct(xb, gamma, beta))
    assert jnp.allclose(out_b.astype(jnp.float32), ref_b.astype(jnp.float32),
                        atol=3e-2, rtol=3e-2), "mismatch (bf16)"

    print("KERNEL_OK")
</pallas_src>

<mosaic_0001>
module attributes {stable_mosaic.version = 11 : i64} {
  func.func @_layernorm_nct_kernel(%arg0: i32, %arg1: i32, %arg2: memref<1x32x128xf32, #tpu.memory_space<vmem>>, %arg3: memref<32x1xf32, #tpu.memory_space<vmem>>, %arg4: memref<32x1xf32, #tpu.memory_space<vmem>>, %arg5: memref<1x32x128xf32, #tpu.memory_space<vmem>>) attributes {dimension_semantics = [#tpu.dimension_semantics<parallel>, #tpu.dimension_semantics<parallel>], iteration_bounds = array<i64: 2, 2>, scalar_prefetch = 0 : i64, scratch_operands = 0 : i64, tpu.core_type = #tpu.core_type<tc>, window_params = [{transform_indices = @transform_0, window_bounds = array<i64: 1, 32, 128>}, {pipeline_mode = #tpu.pipeline_mode<synchronous>, transform_indices = @transform_1, window_bounds = array<i64: 32, 1>}, {pipeline_mode = #tpu.pipeline_mode<synchronous>, transform_indices = @transform_2, window_bounds = array<i64: 32, 1>}, {transform_indices = @transform_3, window_bounds = array<i64: 1, 32, 128>}]} {
    %c0 = arith.constant 0 : index
    %c0_0 = arith.constant 0 : index
    %c0_1 = arith.constant 0 : index
    %0 = vector.load %arg2[%c0, %c0_0, %c0_1] : memref<1x32x128xf32, #tpu.memory_space<vmem>>, vector<1x32x128xf32>
    %cst = arith.constant dense<0.000000e+00> : vector<1x128xf32>
    %1 = vector.multi_reduction <add>, %0, %cst [1] : vector<1x32x128xf32> to vector<1x128xf32>
    %2 = vector.shape_cast %1 : vector<1x128xf32> to vector<1x1x128xf32>
    %3 = arith.mulf %0, %0 : vector<1x32x128xf32>
    %cst_2 = arith.constant dense<0.000000e+00> : vector<1x128xf32>
    %4 = vector.multi_reduction <add>, %3, %cst_2 [1] : vector<1x32x128xf32> to vector<1x128xf32>
    %5 = vector.shape_cast %4 : vector<1x128xf32> to vector<1x1x128xf32>
    %cst_3 = arith.constant 3.125000e-02 : f32
    %6 = vector.broadcast %cst_3 : f32 to vector<1x1x128xf32>
    %7 = arith.mulf %2, %6 : vector<1x1x128xf32>
    %cst_4 = arith.constant 3.125000e-02 : f32
    %8 = vector.broadcast %cst_4 : f32 to vector<1x1x128xf32>
    %9 = arith.mulf %5, %8 : vector<1x1x128xf32>
    %10 = arith.mulf %7, %7 : vector<1x1x128xf32>
    %11 = arith.subf %9, %10 : vector<1x1x128xf32>
    %cst_5 = arith.constant 0.000000e+00 : f32
    %12 = vector.broadcast %cst_5 : f32 to vector<1x1x128xf32>
    %13 = arith.maximumf %11, %12 : vector<1x1x128xf32>
    %cst_6 = arith.constant 9.99999996E-13 : f32
    %14 = vector.broadcast %cst_6 : f32 to vector<1x1x128xf32>
    %15 = arith.addf %13, %14 : vector<1x1x128xf32>
    %16 = math.rsqrt %15 : vector<1x1x128xf32>
    %c0_7 = arith.constant 0 : index
    %c0_8 = arith.constant 0 : index
    %17 = vector.load %arg3[%c0_7, %c0_8] : memref<32x1xf32, #tpu.memory_space<vmem>>, vector<32x1xf32>
    %c0_9 = arith.constant 0 : index
    %c0_10 = arith.constant 0 : index
    %18 = vector.load %arg4[%c0_9, %c0_10] : memref<32x1xf32, #tpu.memory_space<vmem>>, vector<32x1xf32>
    %19 = vector.broadcast %7 : vector<1x1x128xf32> to vector<1x32x128xf32>
    %20 = arith.subf %0, %19 : vector<1x32x128xf32>
    %21 = vector.broadcast %16 : vector<1x1x128xf32> to vector<1x32x128xf32>
    %22 = arith.mulf %20, %21 : vector<1x32x128xf32>
    %23 = vector.shape_cast %17 : vector<32x1xf32> to vector<1x32x1xf32>
    %24 = vector.broadcast %23 : vector<1x32x1xf32> to vector<1x32x128xf32>
    %25 = arith.mulf %22, %24 : vector<1x32x128xf32>
    %26 = vector.shape_cast %18 : vector<32x1xf32> to vector<1x32x1xf32>
    %27 = vector.broadcast %26 : vector<1x32x1xf32> to vector<1x32x128xf32>
    %28 = arith.addf %25, %27 : vector<1x32x128xf32>
    %c0_11 = arith.constant 0 : index
    %c0_12 = arith.constant 0 : index
    %c0_13 = arith.constant 0 : index
    %29 = vector.load %arg5[%c0_11, %c0_12, %c0_13] : memref<1x32x128xf32, #tpu.memory_space<vmem>>, vector<1x32x128xf32>
    tpu.vector_store %arg5[%c0_11, %c0_12, %c0_13], %28 {strides = array<i32>} : memref<1x32x128xf32, #tpu.memory_space<vmem>>, vector<1x32x128xf32>,
    return
  }
  func.func @transform_0(%arg0: i32, %arg1: i32) -> (i32, i32, i32) {
    %c0_i32 = arith.constant 0 : i32
    %c0_i32_0 = arith.constant 0 : i32
    return %arg0, %c0_i32, %arg1 : i32, i32, i32
  }
  func.func @transform_1(%arg0: i32, %arg1: i32) -> (i32, i32) {
    %c0_i32 = arith.constant 0 : i32
    %c0_i32_0 = arith.constant 0 : i32
    %c0_i32_1 = arith.constant 0 : i32
    return %c0_i32, %c0_i32_0 : i32, i32
  }
  func.func @transform_2(%arg0: i32, %arg1: i32) -> (i32, i32) {
    %c0_i32 = arith.constant 0 : i32
    %c0_i32_0 = arith.constant 0 : i32
    %c0_i32_1 = arith.constant 0 : i32
    return %c0_i32, %c0_i32_0 : i32, i32
  }
  func.func @transform_3(%arg0: i32, %arg1: i32) -> (i32, i32, i32) {
    %c0_i32 = arith.constant 0 : i32
    %c0_i32_0 = arith.constant 0 : i32
    return %arg0, %c0_i32, %arg1 : i32, i32, i32
  }
}

</mosaic_0001>

<llo_original>
// kernel: tpu_custom_call.1
$region0: #{tpu_custom_call.1}
  #allocation0 [shape = 'u32[]', space=smem, size = 0x4, offset = 0x4, fixed_abs, tag = 'smem constant byte address 0x4 - core index']
  #allocation1 [shape = 'u32[72,128]{1,0:T(1,128)}', space=vmem, size = 0x9000, scoped, tag = 'internal scratch']
  %s0 = inlined_call_operand.hbm [shape: f32[2,32,256], index: 0, kind: input, shape index: {}]
  %s1 = inlined_call_operand.vmem [shape: f32[32,1], index: 1, kind: input, shape index: {}]
  %s2 = inlined_call_operand.vmem [shape: f32[32,1], index: 2, kind: input, shape index: {}]
  %s3 = inlined_call_operand.hbm [shape: f32[2,32,256], index: 3, kind: output, shape index: {}]
  %s4 = sld [smem:[#allocation0]]
  $region49: #{tpu_custom_call.1} parent=0
    _
  %s6 = ssub.s32 1, %s4
  %s7 = scalar_select 0, %s6, %s4
  $region1: #{tpu_custom_call.1} parent=0
    #allocation2 [shape = 'u8[32768]{0}', space=vmem, size = 0x8000, scoped, tag = 'input window, operand 0']
    #allocation3 [shape = 's32[2]{0}', space=sflag, size = 0x8, scoped, tag = 'scoped memory for tpu_custom_call.1']
    #allocation4 [shape = 's32[2]{0}', space=sflag, size = 0x8, scoped, tag = 'scoped memory for tpu_custom_call.1']
    #allocation5 [shape = 'u8[32768]{0}', space=vmem, size = 0x8000, scoped, tag = 'output window, operand 0']
    %8 = vsyncpa [#allocation3], 0
    %s9 = scalar_lea.sflag [#allocation3], 1
    %10 = vsyncpa %s9, 0
    %11 = vsyncpa [#allocation4], 0
    %s12 = scalar_lea.sflag [#allocation4], 1
    %13 = vsyncpa %s12, 0
    loop: start=0, step=1, limit=6
    $region2: #{tpu_custom_call.1} parent=1 // loop_pre_header
      _
    $region3: #{tpu_custom_call.1} parent=1 // loop_header
      %s15 = sphi 0, %s19
      %p16 = scmp.ge.s32.totalorder %s15, 6
      %s22 = sphi 0, %s34
      %s23 = sphi 0, %s30
      %s24 = sphi 0, %s22
      %s25 = sphi 0, %s23
      %s26 = sphi 0, %s24
      %s27 = sphi 0, %s25
      %s39 = sphi 0, %s41
      %s42 = sphi 0, %s39
      %s43 = sphi 0, %s42
      %s59 = sphi 0, %s43
      %s63 = sphi 0, %s63
      %s65 = sphi 0, %s63
      %s66 = sphi 0, %s65
      %s80 = sphi 0, %s66
      %s84 = sphi 0, %s84
      %s86 = sphi 0, %s84
      %s87 = sphi 0, %s86
      %s101 = sphi 0, %s87
      %s109 = sphi 0, %s111
      %s112 = sphi 0, %s109
      %s113 = sphi 0, %s112
      %s129 = sphi 0, %s113
    $region4: #{tpu_custom_call.1} parent=1 // loop_header_branch
      %18 = sbr.rel (%p16) target = $region8
    $region5: #{tpu_custom_call.1} parent=1 // loop_body
      %s20 = ssub.s32 %s15, 1
      %s21 = ssub.s32 %s15, 2
      %s28 = sadd.s32 1, %s23
      %p29 = scmp.ge.s32.totalorder %s28, 2
      %s30 = scalar_select %p29, 0, %s28
      %s31 = sadd.s32 1, %s22
      %s32 = scalar_select %p29, %s31, %s22
      %p33 = scmp.ge.s32.totalorder %s32, 2
      %s34 = scalar_select %p33, 0, %s32
      %s35 = ssub.s32 %s22, %s34
      %s36 = ssub.s32 %s23, %s30
      %s37 = sor.u32 %s35, %s36
      %p38 = scmp.eq.s32.totalorder %s37, 0
      %s40 = sadd.s32 %s39, 1
      %s41 = scalar_select %p38, %s39, %s40
      %p44 = pneg %p38
      %p45 = scmp.eq.s32.totalorder %s15, 3
      %p46 = por %p44, %p45
      %p47 = scmp.ne.s32.totalorder %s39, %s42
      %p48 = scmp.eq.s32.totalorder %s15, 0
      %p49 = por %p47, %p48
      %p50 = scmp.ne.s32.totalorder %s39, %s42
      %p51 = scmp.eq.s32.totalorder %s20, 3
      %p52 = por %p50, %p51
      %p53 = scmp.ne.s32.totalorder %s42, %s43
      %p54 = scmp.eq.s32.totalorder %s20, 0
      %p55 = por %p53, %p54
      %p56 = scmp.ne.s32.totalorder %s42, %s43
      %p57 = scmp.eq.s32.totalorder %s21, 3
      %p58 = por %p56, %p57
      %p60 = scmp.ne.s32.totalorder %s43, %s59
      %p61 = scmp.eq.s32.totalorder %s21, 0
      %p62 = por %p60, %p61
      %s64 = sadd.s32 %s63, 1
      %p67 = scmp.eq.s32.totalorder %s15, 3
      %p68 = scmp.ne.s32.totalorder %s63, %s65
      %p69 = scmp.eq.s32.totalorder %s15, 0
      %p70 = por %p68, %p69
      %p71 = scmp.ne.s32.totalorder %s63, %s65
      %p72 = scmp.eq.s32.totalorder %s20, 3
      %p73 = por %p71, %p72
      %p74 = scmp.ne.s32.totalorder %s65, %s66
      %p75 = scmp.eq.s32.totalorder %s20, 0
      %p76 = por %p74, %p75
      %p77 = scmp.ne.s32.totalorder %s65, %s66
      %p78 = scmp.eq.s32.totalorder %s21, 3
      %p79 = por %p77, %p78
      %p81 = scmp.ne.s32.totalorder %s66, %s80
      %p82 = scmp.eq.s32.totalorder %s21, 0
      %p83 = por %p81, %p82
      %s85 = sadd.s32 %s84, 1
      %p88 = scmp.eq.s32.totalorder %s15, 3
      %p89 = scmp.ne.s32.totalorder %s84, %s86
      %p90 = scmp.eq.s32.totalorder %s15, 0
      %p91 = por %p89, %p90
      %p92 = scmp.ne.s32.totalorder %s84, %s86
      %p93 = scmp.eq.s32.totalorder %s20, 3
      %p94 = por %p92, %p93
      %p95 = scmp.ne.s32.totalorder %s86, %s87
      %p96 = scmp.eq.s32.totalorder %s20, 0
      %p97 = por %p95, %p96
      %p98 = scmp.ne.s32.totalorder %s86, %s87
      %p99 = scmp.eq.s32.totalorder %s21, 3
      %p100 = por %p98, %p99
      %p102 = scmp.ne.s32.totalorder %s87, %s101
      %p103 = scmp.eq.s32.totalorder %s21, 0
      %p104 = por %p102, %p103
      %s105 = ssub.s32 %s22, %s34
      %s106 = ssub.s32 %s23, %s30
      %s107 = sor.u32 %s105, %s106
      %p108 = scmp.eq.s32.totalorder %s107, 0
      %s110 = sadd.s32 %s109, 1
      %s111 = scalar_select %p108, %s109, %s110
      %p114 = pneg %p108
      %p115 = scmp.eq.s32.totalorder %s15, 3
      %p116 = por %p114, %p115
      %p117 = scmp.ne.s32.totalorder %s109, %s112
      %p118 = scmp.eq.s32.totalorder %s15, 0
      %p119 = por %p117, %p118
      %p120 = scmp.ne.s32.totalorder %s109, %s112
      %p121 = scmp.eq.s32.totalorder %s20, 3
      %p122 = por %p120, %p121
      %p123 = scmp.ne.s32.totalorder %s112, %s113
      %p124 = scmp.eq.s32.totalorder %s20, 0
      %p125 = por %p123, %p124
      %p126 = scmp.ne.s32.totalorder %s112, %s113
      %p127 = scmp.eq.s32.totalorder %s21, 3
      %p128 = por %p126, %p127
      %p130 = scmp.ne.s32.totalorder %s113, %s129
      %p131 = scmp.eq.s32.totalorder %s21, 0
      %p132 = por %p130, %p131
      %p133 = scmp.le.s32.totalorder 1, %s15
      %p134 = scmp.lt.s32.totalorder %s15, 5
      %p135 = pnand %p133, %p134
      %p136 = pneg %p135
      // Predicated region
      $region9: #{tpu_custom_call.1} parent=5 // pred_check
        _
      $region10: #{tpu_custom_call.1} parent=5 // pred_check_branch
        %138 = sbr.rel (%p135) target = $region12
      $region11: #{tpu_custom_call.1} parent=5 // pred_region
        %s139 = ssub.s32 %s15, 1
        // Predicated region
        $region13: #{tpu_custom_call.1} parent=11 // pred_check
          %p140 = pneg %p76
        $region14: #{tpu_custom_call.1} parent=11 // pred_check_branch
          %142 = sbr.rel (%p140) target = $region16
        $region15: #{tpu_custom_call.1} parent=11 // pred_region
          _
        $region16: #{tpu_custom_call.1} parent=11 // pred_fallthru
          _
        // Predicated region
        $region17: #{tpu_custom_call.1} parent=11 // pred_check
          %p143 = pneg %p97
        $region18: #{tpu_custom_call.1} parent=11 // pred_check_branch
          %145 = sbr.rel (%p143) target = $region20
        $region19: #{tpu_custom_call.1} parent=11 // pred_region
          _
        $region20: #{tpu_custom_call.1} parent=11 // pred_fallthru
          _
      $region12: #{tpu_custom_call.1} parent=5 // pred_fallthru
        _
      %p146 = scmp.lt.s32.totalorder %s15, 4
      // Predicated region
      $region21: #{tpu_custom_call.1} parent=5 // pred_check
        %p147 = pneg %p146
      $region22: #{tpu_custom_call.1} parent=5 // pred_check_branch
        %149 = sbr.rel (%p147) target = $region24
      $region23: #{tpu_custom_call.1} parent=5 // pred_region
        // Predicated region
        $region25: #{tpu_custom_call.1} parent=23 // pred_check
          %p150 = pneg %p49
        $region26: #{tpu_custom_call.1} parent=23 // pred_check_branch
          %152 = sbr.rel (%p150) target = $region28
        $region27: #{tpu_custom_call.1} parent=23 // pred_region
          %s153 = sand.u32 %s39, 1
          %s154 = scalar_lea.sflag [#allocation3], %s153
          %s155 = sand.u32 %s39, 1
          %s156 = smul.addr %s155, 32
          %s157 = scalar_lea.vmem [#allocation2], %s156
          %159 = vsyncadd %s154, 0
          %s160 = smul.addr %s22, 8
          %s161 = sadd.s32 %s23, %s160
          %s162 = smul.addr %s161, 8
          %s163 = scalar_lea.hbm %s0, %s162
          %s164 = sshll.u32 %s163, 4
          %s165 = int_to_ptr.hbm [resolvable:$true] %s164
          %s166 = sshll.u32 %s157, 4
          %s167 = int_to_ptr.vmem [resolvable:$true] %s166
          %172 = dma.hbm_to_vmem [thread:$0]  %s165, 512, %s167, %s154, 256, 128, 8
        $region28: #{tpu_custom_call.1} parent=23 // pred_fallthru
          _
      $region24: #{tpu_custom_call.1} parent=5 // pred_fallthru
        _
      %p173 = scmp.le.s32.totalorder 1, %s15
      %p174 = scmp.lt.s32.totalorder %s15, 5
      %p175 = pnand %p173, %p174
      %p176 = pneg %p175
      // Predicated region
      $region29: #{tpu_custom_call.1} parent=5 // pred_check
        _
      $region30: #{tpu_custom_call.1} parent=5 // pred_check_branch
        %178 = sbr.rel (%p175) target = $region32
      $region31: #{tpu_custom_call.1} parent=5 // pred_region
        %s179 = ssub.s32 %s15, 1
        %s180 = sand.u32 %s42, 1
        %s181 = scalar_lea.sflag [#allocation3], %s180
        %s182 = sand.u32 %s42, 1
        %s183 = smul.addr %s182, 32
        %s184 = scalar_lea.vmem [#allocation2], %s183
        // Predicated region
        $region33: #{tpu_custom_call.1} parent=31 // pred_check
          %p185 = pneg %p55
        $region34: #{tpu_custom_call.1} parent=31 // pred_check_branch
          %187 = sbr.rel (%p185) target = $region36
        $region35: #{tpu_custom_call.1} parent=31 // pred_region
          %189 = dma.done %s181, 512
        $region36: #{tpu_custom_call.1} parent=31 // pred_fallthru
          _
        %s190 = sand.u32 %s42, 1
        %s191 = scalar_lea.sflag [#allocation3], %s190
        %s192 = sand.u32 %s42, 1
        %s193 = smul.addr %s192, 32
        %s194 = scalar_lea.vmem [#allocation2], %s193
        %p195 = pneg %p55
        %p196 = pneg %p52
        %p197 = pneg %p76
        %p198 = pneg %p73
        %p199 = pneg %p97
        %p200 = pneg %p94
        %p201 = pneg %p125
        %p202 = pneg %p122
        %s203 = sand.u32 %s112, 1
        %s204 = scalar_lea.sflag [#allocation4], %s203
        %s205 = sand.u32 %s112, 1
        %s206 = smul.addr %s205, 32
        %s207 = scalar_lea.vmem [#allocation5], %s206
        %v208 = vld [vmem:[%s184] sm:$0xff]
        %v209 = vld [vmem:[%s184 + $0x8] sm:$0xff]
        %v210 = vld [vmem:[%s184 + $0x10] sm:$0xff]
        %v211 = vld [vmem:[%s184 + $0x18] sm:$0xff]
        %v212 = vadd.f32 %v208, %v209
        %v213 = vadd.f32 %v212, %v210
        %v214 = vadd.f32 %v213, %v211
        %v215 = vrot.slane %v214, 4
        %v216 = vadd.f32 %v214, %v215
        %v217 = vrot.slane %v216, 2
        %v218 = vadd.f32 %v216, %v217
        %v219 = vrot.slane %v218, 1
        %v220 = vadd.f32 %v218, %v219
        %v221 = vmul.f32 %v208, %v208
        %v222 = vmul.f32 %v209, %v209
        %v223 = vmul.f32 %v210, %v210
        %v224 = vmul.f32 %v211, %v211
        %v225 = vadd.f32 %v221, %v222
        %v226 = vadd.f32 %v225, %v223
        %v227 = vadd.f32 %v226, %v224
        %v228 = vrot.slane %v227, 4
        %v229 = vadd.f32 %v227, %v228
        %v230 = vrot.slane %v229, 2
        %v231 = vadd.f32 %v229, %v230
        %v232 = vrot.slane %v231, 1
        %v233 = vadd.f32 %v231, %v232
        %v234 = vmul.f32 %v220, 0.03125
        %v235 = vmul.f32 %v233, 0.03125
        %v236 = vmul.f32 %v234, %v234
        %v237 = vsub.f32 %v235, %v236
        %v238 = vmax.f32 %v237, 0.0
        %v239 = vadd.f32 %v238, 1e-12
        %v240 = vrsqrt.pop %v239
        %v241 = vmul.f32 %v240, %v239
        %v242 = vmul.f32 %v241, %v240
        %v243 = vmul.f32 0.5, %v242
        %v244 = vsub.f32 1.5, %v243
        %v245 = vmul.f32 %v240, %v244
        %vm246 = vweird.f32 %v239
        %vm247 = vweird.f32 %v240
        %vm248 = vmor %vm246, %vm247
        %v249 = vsel %vm248, %v240, %v245
        %v250 = vld [vmem:[%s1] sm:$0xff]
        %v251 = vld [vmem:[%s1 + $0x8] sm:$0xff]
        %v252 = vld [vmem:[%s1 + $0x10] sm:$0xff]
        %v253 = vld [vmem:[%s1 + $0x18] sm:$0xff]
        %v254 = vld [vmem:[%s2] sm:$0xff]
        %v255 = vld [vmem:[%s2 + $0x8] sm:$0xff]
        %v256 = vld [vmem:[%s2 + $0x10] sm:$0xff]
        %v257 = vld [vmem:[%s2 + $0x18] sm:$0xff]
        %v258 = vsub.f32 %v208, %v234
        %v259 = vsub.f32 %v209, %v234
        %v260 = vsub.f32 %v210, %v234
        %v261 = vsub.f32 %v211, %v234
        %v262 = vmul.f32 %v258, %v249
        %v263 = vmul.f32 %v259, %v249
        %v264 = vmul.f32 %v260, %v249
        %v265 = vmul.f32 %v261, %v249
        %267 = vset.pattern.permute.xlu0 0
        %268 = vperm.xlu0 %267, %v250
        %v269 = vpop.permute.xlu0 %268
        %272 = vset.pattern.permute.xlu0 0
        %273 = vperm.xlu0 %272, %v251
        %v274 = vpop.permute.xlu0 %273
        %277 = vset.pattern.permute.xlu0 0
        %278 = vperm.xlu0 %277, %v252
        %v279 = vpop.permute.xlu0 %278
        %282 = vset.pattern.permute.xlu0 0
        %283 = vperm.xlu0 %282, %v253
        %v284 = vpop.permute.xlu0 %283
        %v286 = vmul.f32 %v262, %v269
        %v287 = vmul.f32 %v263, %v274
        %v288 = vmul.f32 %v264, %v279
        %v289 = vmul.f32 %v265, %v284
        %291 = vset.pattern.permute.xlu0 0
        %292 = vperm.xlu0 %291, %v254
        %v293 = vpop.permute.xlu0 %292
        %296 = vset.pattern.permute.xlu0 0
        %297 = vperm.xlu0 %296, %v255
        %v298 = vpop.permute.xlu0 %297
        %301 = vset.pattern.permute.xlu0 0
        %302 = vperm.xlu0 %301, %v256
        %v303 = vpop.permute.xlu0 %302
        %306 = vset.pattern.permute.xlu0 0
        %307 = vperm.xlu0 %306, %v257
        %v308 = vpop.permute.xlu0 %307
        %v310 = vadd.f32 %v286, %v293
        %v311 = vadd.f32 %v287, %v298
        %v312 = vadd.f32 %v288, %v303
        %v313 = vadd.f32 %v289, %v308
        %314 = vst [vmem:[%s207] sm:$0xff] %v310
        %315 = vst [vmem:[%s207 + $0x8] sm:$0xff] %v311
        %316 = vst [vmem:[%s207 + $0x10] sm:$0xff] %v312
        %317 = vst [vmem:[%s207 + $0x18] sm:$0xff] %v313
        %s318 = sand.u32 %s112, 1
        %s319 = scalar_lea.sflag [#allocation4], %s318
        %s320 = sand.u32 %s112, 1
        %s321 = smul.addr %s320, 32
        %s322 = scalar_lea.vmem [#allocation5], %s321
        // Predicated region
        $region37: #{tpu_custom_call.1} parent=31 // pred_check
          %p323 = pneg %p122
        $region38: #{tpu_custom_call.1} parent=31 // pred_check_branch
          %325 = sbr.rel (%p323) target = $region40
        $region39: #{tpu_custom_call.1} parent=31 // pred_region
          %327 = vsyncadd %s319, 0
          %s328 = smul.addr %s24, 8
          %s329 = sadd.s32 %s25, %s328
          %s330 = smul.addr %s329, 8
          %s331 = scalar_lea.hbm %s3, %s330
          %s332 = sshll.u32 %s322, 4
          %s333 = int_to_ptr.vmem [resolvable:$true] %s332
          %s334 = sshll.u32 %s331, 4
          %s335 = int_to_ptr.hbm [resolvable:$true] %s334
          %340 = dma.vmem_to_hbm [thread:$0]  %s333, 512, %s335, %s319, 128, 256, 8
        $region40: #{tpu_custom_call.1} parent=31 // pred_fallthru
          _
      $region32: #{tpu_custom_call.1} parent=5 // pred_fallthru
        _
      %p341 = scmp.le.s32.totalorder 2, %s15
      // Predicated region
      $region41: #{tpu_custom_call.1} parent=5 // pred_check
        %p342 = pneg %p341
      $region42: #{tpu_custom_call.1} parent=5 // pred_check_branch
        %344 = sbr.rel (%p342) target = $region44
      $region43: #{tpu_custom_call.1} parent=5 // pred_region
        %s345 = ssub.s32 %s15, 2
        // Predicated region
        $region45: #{tpu_custom_call.1} parent=43 // pred_check
          %p346 = pneg %p128
        $region46: #{tpu_custom_call.1} parent=43 // pred_check_branch
          %348 = sbr.rel (%p346) target = $region48
        $region47: #{tpu_custom_call.1} parent=43 // pred_region
          %s349 = sand.u32 %s113, 1
          %s350 = scalar_lea.sflag [#allocation4], %s349
          %s351 = sand.u32 %s113, 1
          %s352 = smul.addr %s351, 32
          %s353 = scalar_lea.vmem [#allocation5], %s352
          %355 = dma.done %s350, 512
        $region48: #{tpu_custom_call.1} parent=43 // pred_fallthru
          _
      $region44: #{tpu_custom_call.1} parent=5 // pred_fallthru
        _
    $region6: #{tpu_custom_call.1} parent=1 // loop_footer
      %s19 = sadd.s32 1, %s15
    $region7: #{tpu_custom_call.1} parent=1 // loop_footer_branch
      %14 = sbr.rel target = $region3
    $region8: #{tpu_custom_call.1} parent=1 // loop_exit
      _
    %356 = vsyncpa [#allocation3], 1
    %s357 = scalar_lea.sflag [#allocation3], 1
    %358 = vsyncpa %s357, 1
    %359 = vsyncpa [#allocation4], 1
    %s360 = scalar_lea.sflag [#allocation4], 1
    %361 = vsyncpa %s360, 1

</llo_original>
